<compile_context>
chip_gen: v7x
topology: tpu7x:2x2x1
jax: 0.10.0
libtpu: 0.0.40
codegen_flags: <defaults>
</compile_context>

<pallas_src>
import functools

import jax
import jax.numpy as jnp
from jax.experimental import pallas as pl
from jax.experimental.pallas import tpu as pltpu

_LANE = 128


# ---------------------------------------------------------------------------
# Faithful no-op forward (production path): forward() takes no args, does
# nothing, returns nothing.  No kernel launch, no HBM traffic.
# ---------------------------------------------------------------------------
def easier_module_forward():
    return None


# ---------------------------------------------------------------------------
# Materialized identity kernel (data-path smoke test only).
# ---------------------------------------------------------------------------
def _identity_kernel(x_ref, o_ref):
    # easier.Module.forward() mutates nothing: pass each block straight
    # through (lane-dense, unmasked vector stores whenever tiles are exact).
    o_ref[...] = x_ref[...]


def _sublane_pack(dtype) -> int:
    # Rows per vreg sublane group by dtype packing: f32->8, bf16->16, int8->32.
    return {4: 8, 2: 16, 1: 32}.get(jnp.dtype(dtype).itemsize, 8)


def _vmem_capacity_bytes() -> int:
    try:
        return int(pltpu.get_tpu_info().vmem_capacity_bytes)
    except Exception:
        # Conservative default = v7x per-TC VMEM.
        return 64 * 1024 * 1024


def _round_down(v: int, m: int) -> int:
    return max(m, (v // m) * m)


def _pick_tile(extent: int, unit: int, limit: int, want_multi: bool = False) -> int:
    """Largest multiple of `unit` that is <= limit (and <= extent).  Prefers an
    exact divisor of `extent` (no masked partial stores); optionally forces at
    least 2 grid steps along this axis (v7x megacore sharding)."""
    if extent <= unit:
        return extent  # full (small) dim is always a legal block
    cap = min(extent, _round_down(limit, unit))
    if want_multi and cap >= extent:
        cap = _round_down((extent + 1) // 2, unit)
    cap = max(unit, cap)
    if extent % unit == 0:
        for cand in range(cap, unit - 1, -unit):
            if extent % cand == 0:
                return cand
    return cap


def _identity_pallas_2d(x2: jax.Array) -> jax.Array:
    rows, cols = x2.shape
    dtype = x2.dtype
    itemsize = jnp.dtype(dtype).itemsize
    pack = _sublane_pack(dtype)

    vmem_cap = _vmem_capacity_bytes()
    # Per-block byte budget: 2 specs x 2 double-buffers = 4 blocks = vmem/2,
    # i.e. ~8 MiB blocks on v7x (64 MiB) and ~16 MiB on v5e/v6e (128 MiB).
    max_block_bytes = max(512 * 1024, vmem_cap // 8)

    # Wide-column guard: tile the lane dim (multiples of 128) only if even one
    # sublane-pack of full-width rows would exceed the block budget.
    if cols > _LANE and pack * cols * itemsize > max_block_bytes:
        col_limit = max(_LANE, max_block_bytes // (pack * itemsize))
        block_cols = _pick_tile(cols, _LANE, col_limit)
    else:
        block_cols = cols
    n_col_steps = pl.cdiv(cols, block_cols)

    # Row tile: sized purely by bytes (no arbitrary row cap), sublane-packed,
    # at least 2 grid steps when the column axis does not already provide them.
    row_limit = max(pack, max_block_bytes // max(1, block_cols * itemsize))
    block_rows = _pick_tile(rows, pack, row_limit, want_multi=(n_col_steps == 1))
    n_row_steps = pl.cdiv(rows, block_rows)

    block_bytes = block_rows * block_cols * itemsize
    # 4 double-buffered blocks + slack; never more than 3/4 of physical VMEM.
    vmem_limit = min(vmem_cap * 3 // 4, max(32 * 1024 * 1024, 6 * block_bytes))

    return pl.pallas_call(
        _identity_kernel,
        out_shape=jax.ShapeDtypeStruct((rows, cols), dtype),
        grid=(n_row_steps, n_col_steps),
        in_specs=[pl.BlockSpec((block_rows, block_cols), lambda i, j: (i, j))],
        out_specs=pl.BlockSpec((block_rows, block_cols), lambda i, j: (i, j)),
        # Output aliases input; combined with jit donation below there is no
        # second HBM allocation and no defensive copy of x.
        input_output_aliases={0: 0},
        # Bandwidth-only op: advertise it so XLA schedules neighbors sensibly.
        cost_estimate=pl.CostEstimate(
            flops=0,
            transcendentals=0,
            bytes_accessed=2 * rows * cols * itemsize,
        ),
        compiler_params=pltpu.CompilerParams(
            # Both tile axes are independent -> shard across v7x TensorCores.
            dimension_semantics=("parallel", "parallel"),
            vmem_limit_bytes=int(vmem_limit),
        ),
    )(x2)


@functools.partial(jax.jit, donate_argnums=(0,))
def easier_module_forward_pallas(x: jax.Array) -> jax.Array:
    """Tiled identity through a Pallas TPU kernel.

    NOTE: `x` is donated — callers must not read `x` after this call.
    """
    orig_shape = x.shape
    if x.ndim == 0:
        return x
    if x.ndim == 1:
        x2 = x.reshape(1, -1)
    elif x.ndim == 2:
        x2 = x
    else:
        x2 = x.reshape(-1, x.shape[-1])
    y2 = _identity_pallas_2d(x2)
    return y2.reshape(orig_shape)


if __name__ == "__main__":
    key = jax.random.PRNGKey(0)

    # Small, lane-dense placeholder tensor (forward() itself takes no inputs):
    # 256x128 f32 -> 128-row blocks, grid=(2, 1), exact tiling, both TCs busy.
    shape = (256, 128)
    dtype = jnp.float32
    x = jax.random.normal(key, shape, dtype=dtype)

    # Faithful no-op semantics of easier.Module.forward().
    assert easier_module_forward() is None

    # Data-path smoke test: identity kernel with donated/aliased buffer.
    y = easier_module_forward_pallas(x)
    jax.block_until_ready(y)

    # x was donated into the kernel; regenerate the expected values instead of
    # reading the (now invalid) input buffer.
    expected = jax.random.normal(key, shape, dtype=dtype)
    assert y.shape == expected.shape and y.dtype == expected.dtype
    assert bool(jnp.allclose(y, expected)), "identity forward mismatch"

    print("KERNEL_OK")
</pallas_src>

<mosaic_0001>
module attributes {stable_mosaic.version = 11 : i64} {
  func.func @_identity_kernel(%arg0: i32, %arg1: i32, %arg2: memref<128x128xf32, #tpu.memory_space<vmem>>, %arg3: memref<128x128xf32, #tpu.memory_space<vmem>>) attributes {dimension_semantics = [#tpu.dimension_semantics<parallel>, #tpu.dimension_semantics<parallel>], iteration_bounds = array<i64: 2, 1>, scalar_prefetch = 0 : i64, scratch_operands = 0 : i64, tpu.core_type = #tpu.core_type<tc>, window_params = [{transform_indices = @transform_0, window_bounds = array<i64: 128, 128>}, {transform_indices = @transform_1, window_bounds = array<i64: 128, 128>}]} {
    %c0 = arith.constant 0 : index
    %c0_0 = arith.constant 0 : index
    %0 = vector.load %arg2[%c0, %c0_0] : memref<128x128xf32, #tpu.memory_space<vmem>>, vector<128x128xf32>
    %c0_1 = arith.constant 0 : index
    %c0_2 = arith.constant 0 : index
    %1 = vector.load %arg3[%c0_1, %c0_2] : memref<128x128xf32, #tpu.memory_space<vmem>>, vector<128x128xf32>
    tpu.vector_store %arg3[%c0_1, %c0_2], %0 {strides = array<i32>} : memref<128x128xf32, #tpu.memory_space<vmem>>, vector<128x128xf32>,
    return
  }
  func.func @transform_0(%arg0: i32, %arg1: i32) -> (i32, i32) {
    %c0_i32 = arith.constant 0 : i32
    return %arg0, %arg1 : i32, i32
  }
  func.func @transform_1(%arg0: i32, %arg1: i32) -> (i32, i32) {
    %c0_i32 = arith.constant 0 : i32
    return %arg0, %arg1 : i32, i32
  }
}

</mosaic_0001>

<llo_original>
// kernel: easier_module_forward_pallas.1
$region0: #{easier_module_forward_pallas.1}
  #allocation0 [shape = 'u32[]', space=smem, size = 0x4, offset = 0x4, fixed_abs, tag = 'smem constant byte address 0x4 - core index']
  #allocation1 [shape = 'u32[144,128]{1,0:T(1,128)}', space=vmem, size = 0x12000, scoped, tag = 'internal scratch']
  %s0 = inlined_call_operand.hbm [shape: f32[256,128], index: 0, kind: input, shape index: {}, may-alias: {0,1}]
  %s1 = inlined_call_operand.hbm [shape: f32[256,128], index: 1, kind: output, shape index: {}, may-alias: {0,1}]
  %s2 = sld [smem:[#allocation0]]
  $region41: #{easier_module_forward_pallas.1} parent=0
    _
  %s4 = ssub.s32 1, %s2
  %s5 = scalar_select 0, %s4, %s2
  $region1: #{easier_module_forward_pallas.1} parent=0
    #allocation2 [shape = 'u8[131072]{0}', space=vmem, size = 0x20000, scoped, tag = 'input window, operand 0']
    #allocation3 [shape = 's32[2]{0}', space=sflag, size = 0x8, scoped, tag = 'scoped memory for easier_module_forward_pallas.1']
    #allocation4 [shape = 's32[2]{0}', space=sflag, size = 0x8, scoped, tag = 'scoped memory for easier_module_forward_pallas.1']
    #allocation5 [shape = 'u8[131072]{0}', space=vmem, size = 0x20000, scoped, tag = 'output window, operand 0']
    %6 = vsyncpa [#allocation3], 0
    %s7 = scalar_lea.sflag [#allocation3], 1
    %8 = vsyncpa %s7, 0
    %9 = vsyncpa [#allocation4], 0
    %s10 = scalar_lea.sflag [#allocation4], 1
    %11 = vsyncpa %s10, 0
    loop: start=0, step=1, limit=4
    $region2: #{easier_module_forward_pallas.1} parent=1 // loop_pre_header
      _
    $region3: #{easier_module_forward_pallas.1} parent=1 // loop_header
      %s13 = sphi 0, %s17
      %p14 = scmp.ge.s32.totalorder %s13, 4
      %s20 = sphi 0, %s32
      %s21 = sphi 0, %s28
      %s22 = sphi 0, %s20
      %s23 = sphi 0, %s21
      %s24 = sphi 0, %s22
      %s25 = sphi 0, %s23
      %s37 = sphi 0, %s39
      %s40 = sphi 0, %s37
      %s41 = sphi 0, %s40
      %s57 = sphi 0, %s41
      %s65 = sphi 0, %s67
      %s68 = sphi 0, %s65
      %s69 = sphi 0, %s68
      %s85 = sphi 0, %s69
    $region4: #{easier_module_forward_pallas.1} parent=1 // loop_header_branch
      %16 = sbr.rel (%p14) target = $region8
    $region5: #{easier_module_forward_pallas.1} parent=1 // loop_body
      %s18 = ssub.s32 %s13, 1
      %s19 = ssub.s32 %s13, 2
      %s26 = sadd.s32 1, %s21
      %p27 = scmp.ge.s32.totalorder %s26, 1
      %s28 = scalar_select %p27, 0, %s26
      %s29 = sadd.s32 1, %s20
      %s30 = scalar_select %p27, %s29, %s20
      %p31 = scmp.ge.s32.totalorder %s30, 2
      %s32 = scalar_select %p31, 0, %s30
      %s33 = ssub.s32 %s20, %s32
      %s34 = ssub.s32 %s21, %s28
      %s35 = sor.u32 %s33, %s34
      %p36 = scmp.eq.s32.totalorder %s35, 0
      %s38 = sadd.s32 %s37, 1
      %s39 = scalar_select %p36, %s37, %s38
      %p42 = pneg %p36
      %p43 = scmp.eq.s32.totalorder %s13, 1
      %p44 = por %p42, %p43
      %p45 = scmp.ne.s32.totalorder %s37, %s40
      %p46 = scmp.eq.s32.totalorder %s13, 0
      %p47 = por %p45, %p46
      %p48 = scmp.ne.s32.totalorder %s37, %s40
      %p49 = scmp.eq.s32.totalorder %s18, 1
      %p50 = por %p48, %p49
      %p51 = scmp.ne.s32.totalorder %s40, %s41
      %p52 = scmp.eq.s32.totalorder %s18, 0
      %p53 = por %p51, %p52
      %p54 = scmp.ne.s32.totalorder %s40, %s41
      %p55 = scmp.eq.s32.totalorder %s19, 1
      %p56 = por %p54, %p55
      %p58 = scmp.ne.s32.totalorder %s41, %s57
      %p59 = scmp.eq.s32.totalorder %s19, 0
      %p60 = por %p58, %p59
      %s61 = ssub.s32 %s20, %s32
      %s62 = ssub.s32 %s21, %s28
      %s63 = sor.u32 %s61, %s62
      %p64 = scmp.eq.s32.totalorder %s63, 0
      %s66 = sadd.s32 %s65, 1
      %s67 = scalar_select %p64, %s65, %s66
      %p70 = pneg %p64
      %p71 = scmp.eq.s32.totalorder %s13, 1
      %p72 = por %p70, %p71
      %p73 = scmp.ne.s32.totalorder %s65, %s68
      %p74 = scmp.eq.s32.totalorder %s13, 0
      %p75 = por %p73, %p74
      %p76 = scmp.ne.s32.totalorder %s65, %s68
      %p77 = scmp.eq.s32.totalorder %s18, 1
      %p78 = por %p76, %p77
      %p79 = scmp.ne.s32.totalorder %s68, %s69
      %p80 = scmp.eq.s32.totalorder %s18, 0
      %p81 = por %p79, %p80
      %p82 = scmp.ne.s32.totalorder %s68, %s69
      %p83 = scmp.eq.s32.totalorder %s19, 1
      %p84 = por %p82, %p83
      %p86 = scmp.ne.s32.totalorder %s69, %s85
      %p87 = scmp.eq.s32.totalorder %s19, 0
      %p88 = por %p86, %p87
      %p89 = scmp.le.s32.totalorder 1, %s13
      %p90 = scmp.lt.s32.totalorder %s13, 3
      %p91 = pnand %p89, %p90
      %p92 = pneg %p91
      // Predicated region
      $region9: #{easier_module_forward_pallas.1} parent=5 // pred_check
        _
      $region10: #{easier_module_forward_pallas.1} parent=5 // pred_check_branch
        %94 = sbr.rel (%p91) target = $region12
      $region11: #{easier_module_forward_pallas.1} parent=5 // pred_region
        %s95 = ssub.s32 %s13, 1
      $region12: #{easier_module_forward_pallas.1} parent=5 // pred_fallthru
        _
      %p96 = scmp.lt.s32.totalorder %s13, 2
      // Predicated region
      $region13: #{easier_module_forward_pallas.1} parent=5 // pred_check
        %p97 = pneg %p96
      $region14: #{easier_module_forward_pallas.1} parent=5 // pred_check_branch
        %99 = sbr.rel (%p97) target = $region16
      $region15: #{easier_module_forward_pallas.1} parent=5 // pred_region
        // Predicated region
        $region17: #{easier_module_forward_pallas.1} parent=15 // pred_check
          %p100 = pneg %p47
        $region18: #{easier_module_forward_pallas.1} parent=15 // pred_check_branch
          %102 = sbr.rel (%p100) target = $region20
        $region19: #{easier_module_forward_pallas.1} parent=15 // pred_region
          %s103 = sand.u32 %s37, 1
          %s104 = scalar_lea.sflag [#allocation3], %s103
          %s105 = sand.u32 %s37, 1
          %s106 = smul.addr %s105, 128
          %s107 = scalar_lea.vmem [#allocation2], %s106
          %s108 = smul.u32 16, %s20
          %s110 = ssub.s32 2048, 2048
          %111 = vsyncadd %s104, %s110
          %s112 = sadd.s32 %s21, %s108
          %s113 = smul.addr %s112, 128
          %s114 = scalar_lea.hbm %s0, %s113
          %s115 = sshll.u32 %s107, 4
          %s116 = int_to_ptr.vmem [resolvable:$true] %s115
          %121 = dma.hbm_to_vmem [thread:$0]  %s114, 2048, %s116, %s104, 128, 128, 8
        $region20: #{easier_module_forward_pallas.1} parent=15 // pred_fallthru
          _
      $region16: #{easier_module_forward_pallas.1} parent=5 // pred_fallthru
        _
      %p122 = scmp.le.s32.totalorder 1, %s13
      %p123 = scmp.lt.s32.totalorder %s13, 3
      %p124 = pnand %p122, %p123
      %p125 = pneg %p124
      // Predicated region
      $region21: #{easier_module_forward_pallas.1} parent=5 // pred_check
        _
      $region22: #{easier_module_forward_pallas.1} parent=5 // pred_check_branch
        %127 = sbr.rel (%p124) target = $region24
      $region23: #{easier_module_forward_pallas.1} parent=5 // pred_region
        %s128 = ssub.s32 %s13, 1
        %s129 = sand.u32 %s40, 1
        %s130 = scalar_lea.sflag [#allocation3], %s129
        %s131 = sand.u32 %s40, 1
        %s132 = smul.addr %s131, 128
        %s133 = scalar_lea.vmem [#allocation2], %s132
        // Predicated region
        $region25: #{easier_module_forward_pallas.1} parent=23 // pred_check
          %p134 = pneg %p53
        $region26: #{easier_module_forward_pallas.1} parent=23 // pred_check_branch
          %136 = sbr.rel (%p134) target = $region28
        $region27: #{easier_module_forward_pallas.1} parent=23 // pred_region
          %137 = dma.done %s130, 2048
        $region28: #{easier_module_forward_pallas.1} parent=23 // pred_fallthru
          _
        %s138 = sand.u32 %s40, 1
        %s139 = scalar_lea.sflag [#allocation3], %s138
        %s140 = sand.u32 %s40, 1
        %s141 = smul.addr %s140, 128
        %s142 = scalar_lea.vmem [#allocation2], %s141
        %p143 = pneg %p53
        %p144 = pneg %p50
        %p145 = pneg %p81
        %p146 = pneg %p78
        %s147 = sand.u32 %s68, 1
        %s148 = scalar_lea.sflag [#allocation4], %s147
        %s149 = sand.u32 %s68, 1
        %s150 = smul.addr %s149, 128
        %s151 = scalar_lea.vmem [#allocation5], %s150
        %s152 = smul.u32 16, %s22
        %s153 = smul.u32 16, %s22
        %v154 = vld [vmem:[%s133] sm:$0xff]
        %v155 = vld [vmem:[%s133 + $0x8] sm:$0xff]
        %v156 = vld [vmem:[%s133 + $0x10] sm:$0xff]
        %v157 = vld [vmem:[%s133 + $0x18] sm:$0xff]
        %v158 = vld [vmem:[%s133 + $0x20] sm:$0xff]
        %v159 = vld [vmem:[%s133 + $0x28] sm:$0xff]
        %v160 = vld [vmem:[%s133 + $0x30] sm:$0xff]
        %v161 = vld [vmem:[%s133 + $0x38] sm:$0xff]
        %v162 = vld [vmem:[%s133 + $0x40] sm:$0xff]
        %v163 = vld [vmem:[%s133 + $0x48] sm:$0xff]
        %v164 = vld [vmem:[%s133 + $0x50] sm:$0xff]
        %v165 = vld [vmem:[%s133 + $0x58] sm:$0xff]
        %v166 = vld [vmem:[%s133 + $0x60] sm:$0xff]
        %v167 = vld [vmem:[%s133 + $0x68] sm:$0xff]
        %v168 = vld [vmem:[%s133 + $0x70] sm:$0xff]
        %v169 = vld [vmem:[%s133 + $0x78] sm:$0xff]
        %170 = vst [vmem:[%s151] sm:$0xff] %v154
        %171 = vst [vmem:[%s151 + $0x8] sm:$0xff] %v155
        %172 = vst [vmem:[%s151 + $0x10] sm:$0xff] %v156
        %173 = vst [vmem:[%s151 + $0x18] sm:$0xff] %v157
        %174 = vst [vmem:[%s151 + $0x20] sm:$0xff] %v158
        %175 = vst [vmem:[%s151 + $0x28] sm:$0xff] %v159
        %176 = vst [vmem:[%s151 + $0x30] sm:$0xff] %v160
        %177 = vst [vmem:[%s151 + $0x38] sm:$0xff] %v161
        %178 = vst [vmem:[%s151 + $0x40] sm:$0xff] %v162
        %179 = vst [vmem:[%s151 + $0x48] sm:$0xff] %v163
        %180 = vst [vmem:[%s151 + $0x50] sm:$0xff] %v164
        %181 = vst [vmem:[%s151 + $0x58] sm:$0xff] %v165
        %182 = vst [vmem:[%s151 + $0x60] sm:$0xff] %v166
        %183 = vst [vmem:[%s151 + $0x68] sm:$0xff] %v167
        %184 = vst [vmem:[%s151 + $0x70] sm:$0xff] %v168
        %185 = vst [vmem:[%s151 + $0x78] sm:$0xff] %v169
        %s186 = sand.u32 %s68, 1
        %s187 = scalar_lea.sflag [#allocation4], %s186
        %s188 = sand.u32 %s68, 1
        %s189 = smul.addr %s188, 128
        %s190 = scalar_lea.vmem [#allocation5], %s189
        // Predicated region
        $region29: #{easier_module_forward_pallas.1} parent=23 // pred_check
          %p191 = pneg %p78
        $region30: #{easier_module_forward_pallas.1} parent=23 // pred_check_branch
          %193 = sbr.rel (%p191) target = $region32
        $region31: #{easier_module_forward_pallas.1} parent=23 // pred_region
          %s194 = smul.u32 16, %s22
          %s196 = ssub.s32 2048, 2048
          %197 = vsyncadd %s187, %s196
          %s198 = sadd.s32 %s23, %s194
          %s199 = smul.addr %s198, 128
          %s200 = scalar_lea.hbm %s1, %s199
          %s201 = sshll.u32 %s190, 4
          %s202 = int_to_ptr.vmem [resolvable:$true] %s201
          %207 = dma.vmem_to_hbm [thread:$0]  %s202, 2048, %s200, %s187, 128, 128, 8
        $region32: #{easier_module_forward_pallas.1} parent=23 // pred_fallthru
          _
      $region24: #{easier_module_forward_pallas.1} parent=5 // pred_fallthru
        _
      %p208 = scmp.le.s32.totalorder 2, %s13
      // Predicated region
      $region33: #{easier_module_forward_pallas.1} parent=5 // pred_check
        %p209 = pneg %p208
      $region34: #{easier_module_forward_pallas.1} parent=5 // pred_check_branch
        %211 = sbr.rel (%p209) target = $region36
      $region35: #{easier_module_forward_pallas.1} parent=5 // pred_region
        %s212 = ssub.s32 %s13, 2
        // Predicated region
        $region37: #{easier_module_forward_pallas.1} parent=35 // pred_check
          %p213 = pneg %p84
        $region38: #{easier_module_forward_pallas.1} parent=35 // pred_check_branch
          %215 = sbr.rel (%p213) target = $region40
        $region39: #{easier_module_forward_pallas.1} parent=35 // pred_region
          %s216 = sand.u32 %s69, 1
          %s217 = scalar_lea.sflag [#allocation4], %s216
          %s218 = sand.u32 %s69, 1
          %s219 = smul.addr %s218, 128
          %s220 = scalar_lea.vmem [#allocation5], %s219
          %221 = dma.done %s217, 2048
        $region40: #{easier_module_forward_pallas.1} parent=35 // pred_fallthru
          _
      $region36: #{easier_module_forward_pallas.1} parent=5 // pred_fallthru
        _
    $region6: #{easier_module_forward_pallas.1} parent=1 // loop_footer
      %s17 = sadd.s32 1, %s13
    $region7: #{easier_module_forward_pallas.1} parent=1 // loop_footer_branch
      %12 = sbr.rel target = $region3
    $region8: #{easier_module_forward_pallas.1} parent=1 // loop_exit
      _
    %222 = vsyncpa [#allocation3], 1
    %s223 = scalar_lea.sflag [#allocation3], 1
    %224 = vsyncpa %s223, 1
    %225 = vsyncpa [#allocation4], 1
    %s226 = scalar_lea.sflag [#allocation4], 1
    %227 = vsyncpa %s226, 1

</llo_original>
